<compile_context>
chip_gen: v5e
topology: v5e:2x2
jax: 0.10.0
libtpu: 0.0.40
codegen_flags: <defaults>
</compile_context>

<pallas_src>
import jax
import jax.numpy as jnp
from jax.experimental import pallas as pl
from jax.experimental.pallas import tpu as pltpu


_LANE = 128
_SUBLANE = 8


def _round_up(x, m):
    return ((x + m - 1) // m) * m


def _vmem_capacity_bytes():
    try:
        return int(pltpu.get_tpu_info().vmem_capacity_bytes)
    except Exception:
        return 64 * 1024 * 1024  # conservative fallback (v7x per-TC capacity)


# --------------------------------------------------------------------------
# Kernels
# --------------------------------------------------------------------------

def _epilogue(zn, zg, xf):
    """relu / softmax / highway combine, all in f32."""
    normal = jnp.maximum(zn, 0.0)
    m = jnp.max(zg, axis=-1, keepdims=True)
    e = jnp.exp(zg - m)
    gate = e * pl.reciprocal(jnp.sum(e, axis=-1, keepdims=True), approx=True)
    # gate*normal + (1-gate)*x  ==  x + gate*(normal - x)   (one mul fewer)
    return xf + gate * (normal - xf)


def highway_kernel_resident(x_ref, w_ref, b_ref, o_ref):
    """One (row_block, C) batch tile; both (C, C) weights resident in VMEM."""
    x = x_ref[...]
    xf = x.astype(jnp.float32)               # exact residual path
    xm = x.astype(w_ref.dtype)                # matmul dtype (bf16 by default)
    zn = jnp.dot(xm, w_ref[0], preferred_element_type=jnp.float32) + b_ref[0]
    zg = jnp.dot(xm, w_ref[1], preferred_element_type=jnp.float32) + b_ref[1]
    o_ref[...] = _epilogue(zn, zg, xf).astype(o_ref.dtype)


def highway_kernel_ktiled(x_slab_ref, x_full_ref, w_ref, b_ref, o_ref,
                          acc_n_ref, acc_g_ref):
    """Contraction-tiled variant: grid=(rows, K); accumulate in f32 VMEM."""
    k = pl.program_id(1)

    @pl.when(k == 0)
    def _init():
        acc_n_ref[...] = jnp.zeros_like(acc_n_ref)
        acc_g_ref[...] = jnp.zeros_like(acc_g_ref)

    xm = x_slab_ref[...].astype(w_ref.dtype)
    acc_n_ref[...] += jnp.dot(xm, w_ref[0], preferred_element_type=jnp.float32)
    acc_g_ref[...] += jnp.dot(xm, w_ref[1], preferred_element_type=jnp.float32)

    @pl.when(k == pl.num_programs(1) - 1)
    def _finalize():
        xf = x_full_ref[...].astype(jnp.float32)
        zn = acc_n_ref[...] + b_ref[0]
        zg = acc_g_ref[...] + b_ref[1]
        o_ref[...] = _epilogue(zn, zg, xf).astype(o_ref.dtype)


# --------------------------------------------------------------------------
# One-time parameter preparation (hoisted out of the forward path)
# --------------------------------------------------------------------------

def prepare_highway_params(wn, bn, wg, bg, *, compute_dtype=jnp.bfloat16):
    """wn, wg: [C, C] in PyTorch (out, in) layout; bn, bg: [C].

    Returns:
      w_stacked: (2, C, C) compute_dtype, already transposed so x @ w[i] works.
      b_stacked: (2, 1, C) float32.
    """
    C = wn.shape[0]
    w_stacked = jnp.stack([wn.T, wg.T]).astype(compute_dtype)
    b_stacked = jnp.stack([bn, bg]).astype(jnp.float32).reshape(2, 1, C)
    return w_stacked, b_stacked


# --------------------------------------------------------------------------
# Forward wrapper
# --------------------------------------------------------------------------

def highway_mlp(x, w_stacked, b_stacked, *, row_tile=512, k_tile=512,
                force_k_tiles=None):
    """x: [N, C]; w_stacked/b_stacked from prepare_highway_params."""
    N, C = x.shape
    assert w_stacked.shape == (2, C, C), w_stacked.shape
    assert b_stacked.shape == (2, 1, C), b_stacked.shape

    cap = _vmem_capacity_bytes()
    budget = int(0.75 * cap)

    x_isz = jnp.dtype(x.dtype).itemsize
    w_isz = jnp.dtype(w_stacked.dtype).itemsize

    def resident_need(rb):
        w_b = 2 * C * C * w_isz                 # single-buffered resident W
        b_b = 2 * _SUBLANE * C * 4              # bias (sublane-padded)
        io_b = 2 * rb * C * 2 * x_isz           # double-buffered x + out tiles
        tmp_b = 8 * rb * C * 4                  # f32 matmul acc + epilogue temps
        return w_b + b_b + io_b + tmp_b

    def ktiled_need(rb, tk):
        w_b = 2 * 2 * tk * C * w_isz            # double-buffered K slabs of W
        b_b = 2 * _SUBLANE * C * 4
        io_b = 2 * rb * tk * x_isz + 2 * rb * C * 2 * x_isz
        acc_b = 2 * rb * C * 4                  # f32 accumulator scratch
        tmp_b = 6 * rb * C * 4
        return w_b + b_b + io_b + acc_b + tmp_b

    def pick_rb(need_fn):
        rb = min(_round_up(max(N, 1), _SUBLANE),
                 _round_up(max(row_tile, _SUBLANE), _SUBLANE))
        while rb > _SUBLANE and need_fn(rb) > budget:
            rb = _round_up(max(rb // 2, _SUBLANE), _SUBLANE)
        return rb

    # Decide between the resident-weight path and the K-tiled path.
    use_ktiled = force_k_tiles is not None
    tk = None
    if use_ktiled:
        nk = int(force_k_tiles)
        assert C % nk == 0 and (C // nk) % _LANE == 0, (
            "force_k_tiles requires C to split into multiples of 128")
        tk = C // nk
    else:
        rb0 = pick_rb(resident_need)
        if resident_need(rb0) > budget and C % _LANE == 0 and C > _LANE:
            # Resident weight does not fit on-chip (e.g. large C on v7x):
            # stream the contraction dimension instead.
            use_ktiled = True
            tk = max(_LANE, (min(k_tile, C) // _LANE) * _LANE)
            while C % tk != 0:
                tk -= _LANE

    if use_ktiled:
        rb = pick_rb(lambda r: ktiled_need(r, tk))
        need = ktiled_need(rb, tk)
    else:
        rb = pick_rb(resident_need)
        need = resident_need(rb)

    # Row blocking: a single full-batch block when it fits, else fixed tiles
    # with the ragged remainder handled by Pallas boundary-block masking.
    if N <= rb:
        row_block, n_rows = N, 1
    else:
        row_block, n_rows = rb, pl.cdiv(N, rb)

    vmem_limit = int(min(0.9 * cap, max(1.25 * need, 32 * 1024 * 1024)))
    out_shape = jax.ShapeDtypeStruct((N, C), x.dtype)

    def run(single_buffer_resident):
        def resident_spec(shape, index_map):
            # Blocks whose index never changes across the grid: one VMEM copy
            # is enough (halves the resident operand footprint).
            if single_buffer_resident:
                return pl.BlockSpec(shape, index_map,
                                    pipeline_mode=pl.Buffered(1))
            return pl.BlockSpec(shape, index_map)

        if not use_ktiled:
            grid_spec = pltpu.PrefetchScalarGridSpec(
                num_scalar_prefetch=0,
                grid=(n_rows,),
                in_specs=[
                    pl.BlockSpec((row_block, C), lambda i: (i, 0)),       # x
                    resident_spec((2, C, C), lambda i: (0, 0, 0)),        # W
                    resident_spec((2, 1, C), lambda i: (0, 0, 0)),        # b
                ],
                out_specs=pl.BlockSpec((row_block, C), lambda i: (i, 0)),
            )
            kernel = highway_kernel_resident
            dim_sem = ("parallel",)
        else:
            grid_spec = pltpu.PrefetchScalarGridSpec(
                num_scalar_prefetch=0,
                grid=(n_rows, C // tk),
                in_specs=[
                    pl.BlockSpec((row_block, tk), lambda i, k: (i, k)),   # x K-slab
                    pl.BlockSpec((row_block, C), lambda i, k: (i, 0)),    # x full (residual)
                    pl.BlockSpec((2, tk, C), lambda i, k: (0, k, 0)),     # W K-slab
                    resident_spec((2, 1, C), lambda i, k: (0, 0, 0)),     # b
                ],
                out_specs=pl.BlockSpec((row_block, C), lambda i, k: (i, 0)),
                scratch_shapes=[pltpu.VMEM((row_block, C), jnp.float32),
                                pltpu.VMEM((row_block, C), jnp.float32)],
            )
            kernel = highway_kernel_ktiled
            dim_sem = ("parallel", "arbitrary")

        call = pl.pallas_call(
            kernel,
            out_shape=out_shape,
            grid_spec=grid_spec,
            compiler_params=pltpu.CompilerParams(
                dimension_semantics=dim_sem,
                vmem_limit_bytes=vmem_limit,
            ),
        )
        if use_ktiled:
            return call(x, x, w_stacked, b_stacked)
        return call(x, w_stacked, b_stacked)

    try:
        return run(single_buffer_resident=True)
    except Exception:
        # pl.Buffered(1) not supported by this jax build: fall back to the
        # default double-buffered resident operands.
        return run(single_buffer_resident=False)


# --------------------------------------------------------------------------
# Reference + self-test
# --------------------------------------------------------------------------

def _reference(x, wn, bn, wg, bg):
    normal = jax.nn.relu(x @ wn.T + bn)
    gate = jax.nn.softmax(x @ wg.T + bg, axis=-1)
    return gate * normal + (1.0 - gate) * x


if __name__ == "__main__":
    key = jax.random.PRNGKey(0)

    def make_params(kp, C, *, zero_bias):
        k_wn, k_wg, k_bn, k_bg = jax.random.split(kp, 4)
        bound = (6.0 / C) ** 0.5      # kaiming_uniform_ fan_in bound
        wn = jax.random.uniform(k_wn, (C, C), jnp.float32, -bound, bound)
        wg = jax.random.uniform(k_wg, (C, C), jnp.float32, -bound, bound)
        if zero_bias:                 # matches nn.init.constant_(bias, 0)
            bn = jnp.zeros((C,), jnp.float32)
            bg = jnp.zeros((C,), jnp.float32)
        else:                         # exercise the bias-add path too
            bn = 0.1 * jax.random.normal(k_bn, (C,), jnp.float32)
            bg = 0.1 * jax.random.normal(k_bg, (C,), jnp.float32)
        return wn, bn, wg, bg

    def check(seed, name, *, N, C, x_dtype=jnp.float32, zero_bias=True,
              tol=7.5e-2, **mlp_kwargs):
        sub = jax.random.fold_in(key, seed)
        k_x, k_p = jax.random.split(sub)
        wn, bn, wg, bg = make_params(k_p, C, zero_bias=zero_bias)
        x = jax.random.normal(k_x, (N, C), jnp.float32)
        w_stacked, b_stacked = prepare_highway_params(wn, bn, wg, bg)

        out = highway_mlp(x.astype(x_dtype), w_stacked, b_stacked, **mlp_kwargs)
        out = jax.block_until_ready(out)

        ref = _reference(x, wn, bn, wg, bg)
        assert out.shape == (N, C), (name, out.shape)
        assert out.dtype == x_dtype, (name, out.dtype)
        err = float(jnp.max(jnp.abs(out.astype(jnp.float32) - ref)))
        assert err < tol, f"{name}: max abs err {err} >= {tol}"

    # 1) Base config implied by the module: batch=16, input_size=32 (resident
    #    path, single row tile, no padding / slicing anywhere).
    check(0, "resident/base", N=16, C=32)
    # 2) Ragged batch: three 16-row tiles, the last one half-empty (boundary
    #    masking instead of materialized batch padding).
    check(1, "resident/ragged-batch", N=40, C=32, zero_bias=False, row_tile=16)
    # 3) Contraction-tiled path (the large-C / v7x VMEM fallback), forced on a
    #    small shape so it is exercised here.
    check(2, "ktiled/forced", N=16, C=256, zero_bias=False, force_k_tiles=2)
    # 4) bf16 activations in/out (halves the HBM activation streams).
    check(3, "resident/bf16-io", N=16, C=32, x_dtype=jnp.bfloat16, tol=1.5e-1)

    print("KERNEL_OK")
</pallas_src>

<mosaic_0001>
module attributes {stable_mosaic.version = 11 : i64} {
  func.func @highway_kernel_resident(%arg0: i32, %arg1: memref<16x32xf32, #tpu.memory_space<vmem>>, %arg2: memref<2x32x32xbf16, #tpu.memory_space<vmem>>, %arg3: memref<2x1x32xf32, #tpu.memory_space<vmem>>, %arg4: memref<16x32xf32, #tpu.memory_space<vmem>>) attributes {dimension_semantics = [#tpu.dimension_semantics<parallel>], iteration_bounds = array<i64: 1>, scalar_prefetch = 0 : i64, scratch_operands = 0 : i64, tpu.core_type = #tpu.core_type<tc>, window_params = [{transform_indices = @transform_0, window_bounds = array<i64: 16, 32>}, {pipeline_mode = #tpu.pipeline_mode<synchronous>, transform_indices = @transform_1, window_bounds = array<i64: 2, 32, 32>}, {pipeline_mode = #tpu.pipeline_mode<synchronous>, transform_indices = @transform_2, window_bounds = array<i64: 2, 1, 32>}, {transform_indices = @transform_3, window_bounds = array<i64: 16, 32>}]} {
    %c0 = arith.constant 0 : index
    %c0_0 = arith.constant 0 : index
    %0 = vector.load %arg1[%c0, %c0_0] : memref<16x32xf32, #tpu.memory_space<vmem>>, vector<16x32xf32>
    %1 = arith.truncf %0 : vector<16x32xf32> to vector<16x32xbf16>
    %c0_1 = arith.constant 0 : index
    %c0_2 = arith.constant 0 : index
    %c0_3 = arith.constant 0 : index
    %2 = vector.load %arg2[%c0_1, %c0_2, %c0_3] : memref<2x32x32xbf16, #tpu.memory_space<vmem>>, vector<1x32x32xbf16>
    %3 = vector.shape_cast %2 : vector<1x32x32xbf16> to vector<32x32xbf16>
    %cst = arith.constant dense<0.000000e+00> : vector<16x32xf32>
    %4 = tpu.matmul %1, %3, %cst {dimension_numbers = #tpu.dot_dimension_numbers<[1], [0], [0], [1], [0, 0, 1, 1], [], []>} : vector<16x32xbf16>, vector<32x32xbf16>, vector<16x32xf32> -> vector<16x32xf32>
    %c0_4 = arith.constant 0 : index
    %c0_5 = arith.constant 0 : index
    %c0_6 = arith.constant 0 : index
    %5 = vector.load %arg3[%c0_4, %c0_5, %c0_6] : memref<2x1x32xf32, #tpu.memory_space<vmem>>, vector<1x1x32xf32>
    %6 = vector.shape_cast %5 : vector<1x1x32xf32> to vector<1x32xf32>
    %7 = vector.broadcast %6 : vector<1x32xf32> to vector<16x32xf32>
    %8 = arith.addf %4, %7 : vector<16x32xf32>
    %c1 = arith.constant 1 : index
    %c0_7 = arith.constant 0 : index
    %c0_8 = arith.constant 0 : index
    %9 = vector.load %arg2[%c1, %c0_7, %c0_8] : memref<2x32x32xbf16, #tpu.memory_space<vmem>>, vector<1x32x32xbf16>
    %10 = vector.shape_cast %9 : vector<1x32x32xbf16> to vector<32x32xbf16>
    %cst_9 = arith.constant dense<0.000000e+00> : vector<16x32xf32>
    %11 = tpu.matmul %1, %10, %cst_9 {dimension_numbers = #tpu.dot_dimension_numbers<[1], [0], [0], [1], [0, 0, 1, 1], [], []>} : vector<16x32xbf16>, vector<32x32xbf16>, vector<16x32xf32> -> vector<16x32xf32>
    %c1_10 = arith.constant 1 : index
    %c0_11 = arith.constant 0 : index
    %c0_12 = arith.constant 0 : index
    %12 = vector.load %arg3[%c1_10, %c0_11, %c0_12] : memref<2x1x32xf32, #tpu.memory_space<vmem>>, vector<1x1x32xf32>
    %13 = vector.shape_cast %12 : vector<1x1x32xf32> to vector<1x32xf32>
    %14 = vector.broadcast %13 : vector<1x32xf32> to vector<16x32xf32>
    %15 = arith.addf %11, %14 : vector<16x32xf32>
    %cst_13 = arith.constant 0.000000e+00 : f32
    %16 = vector.broadcast %cst_13 : f32 to vector<16x32xf32>
    %17 = arith.maximumf %8, %16 : vector<16x32xf32>
    %cst_14 = arith.constant dense<0xFF800000> : vector<16xf32>
    %18 = vector.multi_reduction <maximumf>, %15, %cst_14 [1] : vector<16x32xf32> to vector<16xf32>
    %19 = vector.shape_cast %18 : vector<16xf32> to vector<16x1xf32>
    %20 = vector.broadcast %19 : vector<16x1xf32> to vector<16x32xf32>
    %21 = arith.subf %15, %20 : vector<16x32xf32>
    %22 = math.exp %21 : vector<16x32xf32>
    %cst_15 = arith.constant dense<0.000000e+00> : vector<16xf32>
    %23 = vector.multi_reduction <add>, %22, %cst_15 [1] : vector<16x32xf32> to vector<16xf32>
    %24 = vector.shape_cast %23 : vector<16xf32> to vector<16x1xf32>
    %25 = tpu.reciprocal %24 {approx = true} : vector<16x1xf32> -> vector<16x1xf32>
    %26 = vector.broadcast %25 : vector<16x1xf32> to vector<16x32xf32>
    %27 = arith.mulf %22, %26 : vector<16x32xf32>
    %28 = arith.subf %17, %0 : vector<16x32xf32>
    %29 = arith.mulf %27, %28 : vector<16x32xf32>
    %30 = arith.addf %0, %29 : vector<16x32xf32>
    %c0_16 = arith.constant 0 : index
    %c0_17 = arith.constant 0 : index
    %31 = vector.load %arg4[%c0_16, %c0_17] : memref<16x32xf32, #tpu.memory_space<vmem>>, vector<16x32xf32>
    tpu.vector_store %arg4[%c0_16, %c0_17], %30 {strides = array<i32>} : memref<16x32xf32, #tpu.memory_space<vmem>>, vector<16x32xf32>,
    return
  }
  func.func @transform_0(%arg0: i32) -> (i32, i32) {
    %c0_i32 = arith.constant 0 : i32
    %c0_i32_0 = arith.constant 0 : i32
    return %arg0, %c0_i32 : i32, i32
  }
  func.func @transform_1(%arg0: i32) -> (i32, i32, i32) {
    %c0_i32 = arith.constant 0 : i32
    %c0_i32_0 = arith.constant 0 : i32
    %c0_i32_1 = arith.constant 0 : i32
    %c0_i32_2 = arith.constant 0 : i32
    return %c0_i32, %c0_i32_0, %c0_i32_1 : i32, i32, i32
  }
  func.func @transform_2(%arg0: i32) -> (i32, i32, i32) {
    %c0_i32 = arith.constant 0 : i32
    %c0_i32_0 = arith.constant 0 : i32
    %c0_i32_1 = arith.constant 0 : i32
    %c0_i32_2 = arith.constant 0 : i32
    return %c0_i32, %c0_i32_0, %c0_i32_1 : i32, i32, i32
  }
  func.func @transform_3(%arg0: i32) -> (i32, i32) {
    %c0_i32 = arith.constant 0 : i32
    %c0_i32_0 = arith.constant 0 : i32
    return %arg0, %c0_i32 : i32, i32
  }
}

module attributes {stable_mosaic.version = 11 : i64} {
  func.func @highway_kernel_resident(%arg0: i32, %arg1: memref<16x32xf32, #tpu.memory_space<vmem>>, %arg2: memref<2x32x32xbf16, #tpu.memory_space<vmem>>, %arg3: memref<2x1x32xf32, #tpu.memory_space<vmem>>, %arg4: memref<16x32xf32, #tpu.memory_space<vmem>>) attributes {dimension_semantics = [#tpu.dimension_semantics<parallel>], iteration_bounds = array<i64: 1>, scalar_prefetch = 0 : i64, scratch_operands = 0 : i64, tpu.core_type = #tpu.core_type<tc>, window_params = [{transform_indices = @transform_0, window_bounds = array<i64: 16, 32>}, {pipeline_mode = #tpu.pipeline_mode<synchronous>, transform_indices = @transform_1, window_bounds = array<i64: 2, 32, 32>}, {pipeline_mode = #tpu.pipeline_mode<synchronous>, transform_indices = @transform_2, window_bounds = array<i64: 2, 1, 32>}, {transform_indices = @transform_3, window_bounds = array<i64: 16, 32>}]} {
    %c0 = arith.constant 0 : index
    %c0_0 = arith.constant 0 : index
    %0 = vector.load %arg1[%c0, %c0_0] : memref<16x32xf32, #tpu.memory_space<vmem>>, vector<16x32xf32>
    %1 = arith.truncf %0 : vector<16x32xf32> to vector<16x32xbf16>
    %c0_1 = arith.constant 0 : index
    %c0_2 = arith.constant 0 : index
    %c0_3 = arith.constant 0 : index
    %2 = vector.load %arg2[%c0_1, %c0_2, %c0_3] : memref<2x32x32xbf16, #tpu.memory_space<vmem>>, vector<1x32x32xbf16>
    %3 = vector.shape_cast %2 : vector<1x32x32xbf16> to vector<32x32xbf16>
    %cst = arith.constant dense<0.000000e+00> : vector<16x32xf32>
    %4 = tpu.matmul %1, %3, %cst {dimension_numbers = #tpu.dot_dimension_numbers<[1], [0], [0], [1], [0, 0, 1, 1], [], []>} : vector<16x32xbf16>, vector<32x32xbf16>, vector<16x32xf32> -> vector<16x32xf32>
    %c0_4 = arith.constant 0 : index
    %c0_5 = arith.constant 0 : index
    %c0_6 = arith.constant 0 : index
    %5 = vector.load %arg3[%c0_4, %c0_5, %c0_6] : memref<2x1x32xf32, #tpu.memory_space<vmem>>, vector<1x1x32xf32>
    %6 = vector.shape_cast %5 : vector<1x1x32xf32> to vector<1x32xf32>
    %7 = vector.broadcast %6 : vector<1x32xf32> to vector<16x32xf32>
    %8 = arith.addf %4, %7 : vector<16x32xf32>
    %c1 = arith.constant 1 : index
    %c0_7 = arith.constant 0 : index
    %c0_8 = arith.constant 0 : index
    %9 = vector.load %arg2[%c1, %c0_7, %c0_8] : memref<2x32x32xbf16, #tpu.memory_space<vmem>>, vector<1x32x32xbf16>
    %10 = vector.shape_cast %9 : vector<1x32x32xbf16> to vector<32x32xbf16>
    %cst_9 = arith.constant dense<0.000000e+00> : vector<16x32xf32>
    %11 = tpu.matmul %1, %10, %cst_9 {dimension_numbers = #tpu.dot_dimension_numbers<[1], [0], [0], [1], [0, 0, 1, 1], [], []>} : vector<16x32xbf16>, vector<32x32xbf16>, vector<16x32xf32> -> vector<16x32xf32>
    %c1_10 = arith.constant 1 : index
    %c0_11 = arith.constant 0 : index
    %c0_12 = arith.constant 0 : index
    %12 = vector.load %arg3[%c1_10, %c0_11, %c0_12] : memref<2x1x32xf32, #tpu.memory_space<vmem>>, vector<1x1x32xf32>
    %13 = vector.shape_cast %12 : vector<1x1x32xf32> to vector<1x32xf32>
    %14 = vector.broadcast %13 : vector<1x32xf32> to vector<16x32xf32>
    %15 = arith.addf %11, %14 : vector<16x32xf32>
    %cst_13 = arith.constant 0.000000e+00 : f32
    %16 = vector.broadcast %cst_13 : f32 to vector<16x32xf32>
    %17 = arith.maximumf %8, %16 : vector<16x32xf32>
    %cst_14 = arith.constant dense<0xFF800000> : vector<16xf32>
    %18 = vector.multi_reduction <maximumf>, %15, %cst_14 [1] : vector<16x32xf32> to vector<16xf32>
    %19 = vector.shape_cast %18 : vector<16xf32> to vector<16x1xf32>
    %20 = vector.broadcast %19 : vector<16x1xf32> to vector<16x32xf32>
    %21 = arith.subf %15, %20 : vector<16x32xf32>
    %22 = math.exp %21 : vector<16x32xf32>
    %cst_15 = arith.constant dense<0.000000e+00> : vector<16xf32>
    %23 = vector.multi_reduction <add>, %22, %cst_15 [1] : vector<16x32xf32> to vector<16xf32>
    %24 = vector.shape_cast %23 : vector<16xf32> to vector<16x1xf32>
    %25 = tpu.reciprocal %24 {approx = true} : vector<16x1xf32> -> vector<16x1xf32>
    %26 = vector.broadcast %25 : vector<16x1xf32> to vector<16x32xf32>
    %27 = arith.mulf %22, %26 : vector<16x32xf32>
    %28 = arith.subf %17, %0 : vector<16x32xf32>
    %29 = arith.mulf %27, %28 : vector<16x32xf32>
    %30 = arith.addf %0, %29 : vector<16x32xf32>
    %c0_16 = arith.constant 0 : index
    %c0_17 = arith.constant 0 : index
    %31 = vector.load %arg4[%c0_16, %c0_17] : memref<16x32xf32, #tpu.memory_space<vmem>>, vector<16x32xf32>
    tpu.vector_store %arg4[%c0_16, %c0_17], %30 {strides = array<i32>} : memref<16x32xf32, #tpu.memory_space<vmem>>, vector<16x32xf32>,
    return
  }
  func.func @transform_0(%arg0: i32) -> (i32, i32) {
    %c0_i32 = arith.constant 0 : i32
    %c0_i32_0 = arith.constant 0 : i32
    return %arg0, %c0_i32 : i32, i32
  }
  func.func @transform_1(%arg0: i32) -> (i32, i32, i32) {
    %c0_i32 = arith.constant 0 : i32
    %c0_i32_0 = arith.constant 0 : i32
    %c0_i32_1 = arith.constant 0 : i32
    %c0_i32_2 = arith.constant 0 : i32
    return %c0_i32, %c0_i32_0, %c0_i32_1 : i32, i32, i32
  }
  func.func @transform_2(%arg0: i32) -> (i32, i32, i32) {
    %c0_i32 = arith.constant 0 : i32
    %c0_i32_0 = arith.constant 0 : i32
    %c0_i32_1 = arith.constant 0 : i32
    %c0_i32_2 = arith.constant 0 : i32
    return %c0_i32, %c0_i32_0, %c0_i32_1 : i32, i32, i32
  }
  func.func @transform_3(%arg0: i32) -> (i32, i32) {
    %c0_i32 = arith.constant 0 : i32
    %c0_i32_0 = arith.constant 0 : i32
    return %arg0, %c0_i32 : i32, i32
  }
}

</mosaic_0001>

<llo_original>
// kernel: tpu_custom_call.1
$region0: #{tpu_custom_call.1}
  #allocation0 [shape = 'u32[]', space=smem, size = 0x4, offset = 0x4, fixed_abs, tag = 'smem constant byte address 0x4 - core index']
  #allocation1 [shape = 'u32[72,128]{1,0:T(1,128)}', space=vmem, size = 0x9000, scoped, tag = 'internal scratch']
  %s0 = inlined_call_operand.hbm [shape: f32[16,32], index: 0, kind: input, shape index: {}]
  %s1 = inlined_call_operand.hbm [shape: bf16[2,32,32], index: 1, kind: input, shape index: {}]
  %s2 = inlined_call_operand.hbm [shape: f32[2,1,32], index: 2, kind: input, shape index: {}]
  %s3 = inlined_call_operand.hbm [shape: f32[16,32], index: 3, kind: output, shape index: {}]
  %s4 = sld [smem:[#allocation0]]
  $region34: #{tpu_custom_call.1} parent=0
    _
  %s6 = ssub.s32 1, %s4
  %s7 = scalar_select 0, %s6, %s4
  $region1: #{tpu_custom_call.1} parent=0
    #allocation2 [shape = 'u8[8192]{0}', space=vmem, size = 0x2000, scoped, tag = 'input window, operand 0, single buffered']
    #allocation3 [shape = 's32[1]{0}', space=sflag, size = 0x4, scoped, tag = 'scoped memory for tpu_custom_call.1']
    #allocation4 [shape = 's32[1]{0}', space=sflag, size = 0x4, scoped, tag = 'scoped memory for tpu_custom_call.1']
    #allocation5 [shape = 'u8[16384]{0}', space=vmem, size = 0x4000, scoped, tag = 'input window, operand 1, single buffered']
    #allocation6 [shape = 's32[1]{0}', space=sflag, size = 0x4, scoped, tag = 'scoped memory for tpu_custom_call.1']
    #allocation7 [shape = 'u8[1024]{0}', space=vmem, size = 0x400, scoped, tag = 'input window, operand 2, single buffered']
    #allocation8 [shape = 'u8[8192]{0}', space=vmem, size = 0x2000, scoped, tag = 'output window, operand 0, single buffered']
    %8 = vsyncpa [#allocation3], 0
    %9 = vsyncpa [#allocation6], 0
    %10 = vsyncpa [#allocation4], 0
    // Predicated region
    $region2: #{tpu_custom_call.1} parent=1 // pred_check
      _
    $region3: #{tpu_custom_call.1} parent=1 // pred_check_branch
      %12 = sbr.rel (0) target = $region5
    $region4: #{tpu_custom_call.1} parent=1 // pred_region
      %14 = vsyncadd [#allocation3], 0
      %s15 = sshll.u32 %s0, 4
      %s16 = int_to_ptr.hbm [resolvable:$true] %s15
      %s17 = sshll.u32 [#allocation2], 4
      %s18 = int_to_ptr.vmem [resolvable:$true] %s17
      %23 = dma.hbm_to_vmem [thread:$0]  %s16, 256, %s18, [#allocation3], 128, 128, 8
    $region5: #{tpu_custom_call.1} parent=1 // pred_fallthru
      _
    // Predicated region
    $region6: #{tpu_custom_call.1} parent=1 // pred_check
      _
    $region7: #{tpu_custom_call.1} parent=1 // pred_check_branch
      %25 = sbr.rel (0) target = $region9
    $region8: #{tpu_custom_call.1} parent=1 // pred_region
      %27 = vsyncadd [#allocation6], 0
      %s28 = sshll.u32 %s1, 4
      %s29 = int_to_ptr.hbm [resolvable:$true] %s28
      %s30 = sshll.u32 [#allocation5], 4
      %s31 = int_to_ptr.vmem [resolvable:$true] %s30
      %36 = dma.hbm_to_vmem [thread:$0]  %s29, 512, %s31, [#allocation6], 64, 64, 4
    $region9: #{tpu_custom_call.1} parent=1 // pred_fallthru
      _
    // Predicated region
    $region10: #{tpu_custom_call.1} parent=1 // pred_check
      _
    $region11: #{tpu_custom_call.1} parent=1 // pred_check_branch
      %38 = sbr.rel (0) target = $region13
    $region12: #{tpu_custom_call.1} parent=1 // pred_region
      %40 = vsyncadd [#allocation6], 0
      %s41 = sshll.u32 %s2, 4
      %s42 = int_to_ptr.hbm [resolvable:$true] %s41
      %s43 = sshll.u32 [#allocation7], 4
      %s44 = int_to_ptr.vmem [resolvable:$true] %s43
      %49 = dma.hbm_to_vmem [thread:$0]  %s42, 32, %s44, [#allocation6], 16, 16, 1
    $region13: #{tpu_custom_call.1} parent=1 // pred_fallthru
      _
    // Predicated region
    $region14: #{tpu_custom_call.1} parent=1 // pred_check
      _
    $region15: #{tpu_custom_call.1} parent=1 // pred_check_branch
      %51 = sbr.rel (0) target = $region17
    $region16: #{tpu_custom_call.1} parent=1 // pred_region
      %53 = dma.done [#allocation3], 256
    $region17: #{tpu_custom_call.1} parent=1 // pred_fallthru
      _
    // Predicated region
    $region18: #{tpu_custom_call.1} parent=1 // pred_check
      _
    $region19: #{tpu_custom_call.1} parent=1 // pred_check_branch
      %55 = sbr.rel (0) target = $region21
    $region20: #{tpu_custom_call.1} parent=1 // pred_region
      %57 = dma.done [#allocation6], 512
    $region21: #{tpu_custom_call.1} parent=1 // pred_fallthru
      _
    // Predicated region
    $region22: #{tpu_custom_call.1} parent=1 // pred_check
      _
    $region23: #{tpu_custom_call.1} parent=1 // pred_check_branch
      %59 = sbr.rel (0) target = $region25
    $region24: #{tpu_custom_call.1} parent=1 // pred_region
      %61 = dma.done [#allocation6], 32
    $region25: #{tpu_custom_call.1} parent=1 // pred_fallthru
      _
    %v63 = vld [vmem:[#allocation2] sm:$0xff]
    %v64 = vld [vmem:[#allocation2 + $0x8] sm:$0xff]
    %v65 = vpack.c.bf16 %v64, %v63
    %v66 = vld [vmem:[#allocation5] sm:$0xf]
    %v67 = vld [vmem:[#allocation5 + $0x4] sm:$0xf]
    %v68 = vld [vmem:[#allocation5 + $0x8] sm:$0xf]
    %v69 = vld [vmem:[#allocation5 + $0xc] sm:$0xf]
    %v70 = vld [vmem:[#allocation7] sm:$0x1]
    %v72 = vperm.slane %v70, 0
    %v78 = vunpack.c.l.b16 %v66
    %v79 = vunpack.c.l.b16 %v67
    %v80 = vunpack.c.l.b16 %v68
    %v81 = vunpack.c.l.b16 %v69
    %v82 = vpack.c.b16 %v79, %v78
    %v83 = vpack.c.b16 %v81, %v80
    %vm86 = vcmask 261120
    %v88 = vsel %vm86, %v65, 0
    %90 = vmatpush.bf16.msra.mxu0 0
    %91 = vmatpush.bf16.msra.mxu0 0
    %92 = vmatpush.bf16.msra.mxu0 0
    %93 = vmatpush.bf16.msra.mxu0 0
    %94 = vmatpush.bf16.msra.mxu0 0
    %95 = vmatpush.bf16.msra.mxu0 0
    %96 = vmatpush.bf16.msra.mxu0 %v83
    %97 = vmatpush.bf16.msra.mxu0 %v82
    %98 = vmatmul.bf16.gmra.mxu0 %v88
    %v99 = vpop.f32.mrf.mxu0
    %v100 = vadd.f32 %v72, %v99
    %v101 = vpop.f32.mrf.mxu0
    %v102 = vadd.f32 %v72, %v101
    %103 = vdwg.mxu0
    %s104 = scalar_lea.vmem [#allocation5], 16
    %v105 = vld [vmem:[%s104] sm:$0xf]
    %v106 = vld [vmem:[%s104 + $0x4] sm:$0xf]
    %v107 = vld [vmem:[%s104 + $0x8] sm:$0xf]
    %v108 = vld [vmem:[%s104 + $0xc] sm:$0xf]
    %s109 = scalar_lea.vmem [#allocation7], 1
    %v110 = vld [vmem:[%s109] sm:$0x1]
    %v112 = vperm.slane %v110, 0
    %v118 = vunpack.c.l.b16 %v105
    %v119 = vunpack.c.l.b16 %v106
    %v120 = vunpack.c.l.b16 %v107
    %v121 = vunpack.c.l.b16 %v108
    %v122 = vpack.c.b16 %v119, %v118
    %v123 = vpack.c.b16 %v121, %v120
    %126 = vmatpush.bf16.msra.mxu0 0
    %127 = vmatpush.bf16.msra.mxu0 0
    %128 = vmatpush.bf16.msra.mxu0 0
    %129 = vmatpush.bf16.msra.mxu0 0
    %130 = vmatpush.bf16.msra.mxu0 0
    %131 = vmatpush.bf16.msra.mxu0 0
    %132 = vmatpush.bf16.msra.mxu0 %v123
    %133 = vmatpush.bf16.msra.mxu0 %v122
    %134 = vmatmul.bf16.gmra.mxu0 %v88
    %v135 = vpop.f32.mrf.mxu0
    %v136 = vadd.f32 %v112, %v135
    %v137 = vpop.f32.mrf.mxu0
    %v138 = vadd.f32 %v112, %v137
    %139 = vdwg.mxu0
    %v140 = vmax.f32 %v100, 0.0
    %v141 = vmax.f32 %v102, 0.0
    %v142 = vsel %vm86, %v136, -inf
    %143 = vmax.xlane.f32.xlu0 %v142
    %v144 = vpop.xlane.xlu0 %143
    %v145 = vsel %vm86, %v138, -inf
    %146 = vmax.xlane.f32.xlu0 %v145
    %v147 = vpop.xlane.xlu0 %146
    %v148 = vsub.f32 %v136, %v144
    %v149 = vsub.f32 %v138, %v147
    %v150 = vmul.f32 %v148, 1.442695
    %v151 = vpow.pop %v150
    %v152 = vmul.f32 %v149, 1.442695
    %v153 = vpow.pop %v152
    %v154 = vsel %vm86, %v151, 0.0
    %155 = vadd.xlane.f32.xlu0 %v154
    %v156 = vpop.xlane.xlu0 %155
    %v157 = vsel %vm86, %v153, 0.0
    %158 = vadd.xlane.f32.xlu0 %v157
    %v159 = vpop.xlane.xlu0 %158
    %v160 = vrcp.pop %v156
    %v161 = vrcp.pop %v159
    %v162 = vmul.f32 %v151, %v160
    %v163 = vmul.f32 %v153, %v161
    %v164 = vsub.f32 %v140, %v63
    %v165 = vsub.f32 %v141, %v64
    %v166 = vmul.f32 %v162, %v164
    %v167 = vmul.f32 %v163, %v165
    %v168 = vadd.f32 %v63, %v166
    %v169 = vadd.f32 %v64, %v167
    %170 = vst.msk [vmem:[#allocation8] sm:$0xff] %vm86, %v168
    %171 = vst.msk [vmem:[#allocation8 + $0x8] sm:$0xff] %vm86, %v169
    // Predicated region
    $region26: #{tpu_custom_call.1} parent=1 // pred_check
      _
    $region27: #{tpu_custom_call.1} parent=1 // pred_check_branch
      %173 = sbr.rel (0) target = $region29
    $region28: #{tpu_custom_call.1} parent=1 // pred_region
      %175 = vsyncadd [#allocation4], 0
      %s176 = sshll.u32 [#allocation8], 4
      %s177 = int_to_ptr.vmem [resolvable:$true] %s176
      %s178 = sshll.u32 %s3, 4
      %s179 = int_to_ptr.hbm [resolvable:$true] %s178
      %184 = dma.vmem_to_hbm [thread:$0]  %s177, 256, %s179, [#allocation4], 128, 128, 8
    $region29: #{tpu_custom_call.1} parent=1 // pred_fallthru
      _
    // Predicated region
    $region30: #{tpu_custom_call.1} parent=1 // pred_check
      _
    $region31: #{tpu_custom_call.1} parent=1 // pred_check_branch
      %186 = sbr.rel (0) target = $region33
    $region32: #{tpu_custom_call.1} parent=1 // pred_region
      %188 = dma.done [#allocation4], 256
    $region33: #{tpu_custom_call.1} parent=1 // pred_fallthru
      _
    %189 = vsyncpa [#allocation3], 1
    %190 = vsyncpa [#allocation6], 1
    %191 = vsyncpa [#allocation4], 1

// kernel: tpu_custom_call.1
$region0: #{tpu_custom_call.1}
  #allocation0 [shape = 'u32[]', space=smem, size = 0x4, offset = 0x4, fixed_abs, tag = 'smem constant byte address 0x4 - core index']
  #allocation1 [shape = 'u32[72,128]{1,0:T(1,128)}', space=vmem, size = 0x9000, scoped, tag = 'internal scratch']
  %s0 = inlined_call_operand.hbm [shape: f32[16,32], index: 0, kind: input, shape index: {}]
  %s1 = inlined_call_operand.hbm [shape: bf16[2,32,32], index: 1, kind: input, shape index: {}]
  %s2 = inlined_call_operand.hbm [shape: f32[2,1,32], index: 2, kind: input, shape index: {}]
  %s3 = inlined_call_operand.hbm [shape: f32[16,32], index: 3, kind: output, shape index: {}]
  %s4 = sld [smem:[#allocation0]]
  $region34: #{tpu_custom_call.1} parent=0
    _
  %s6 = ssub.s32 1, %s4
  %s7 = scalar_select 0, %s6, %s4
  $region1: #{tpu_custom_call.1} parent=0
    #allocation2 [shape = 'u8[8192]{0}', space=vmem, size = 0x2000, scoped, tag = 'input window, operand 0, single buffered']
    #allocation3 [shape = 's32[1]{0}', space=sflag, size = 0x4, scoped, tag = 'scoped memory for tpu_custom_call.1']
    #allocation4 [shape = 's32[1]{0}', space=sflag, size = 0x4, scoped, tag = 'scoped memory for tpu_custom_call.1']
    #allocation5 [shape = 'u8[16384]{0}', space=vmem, size = 0x4000, scoped, tag = 'input window, operand 1, single buffered']
    #allocation6 [shape = 's32[1]{0}', space=sflag, size = 0x4, scoped, tag = 'scoped memory for tpu_custom_call.1']
    #allocation7 [shape = 'u8[1024]{0}', space=vmem, size = 0x400, scoped, tag = 'input window, operand 2, single buffered']
    #allocation8 [shape = 'u8[8192]{0}', space=vmem, size = 0x2000, scoped, tag = 'output window, operand 0, single buffered']
    %8 = vsyncpa [#allocation3], 0
    %9 = vsyncpa [#allocation6], 0
    %10 = vsyncpa [#allocation4], 0
    // Predicated region
    $region2: #{tpu_custom_call.1} parent=1 // pred_check
      _
    $region3: #{tpu_custom_call.1} parent=1 // pred_check_branch
      %12 = sbr.rel (0) target = $region5
    $region4: #{tpu_custom_call.1} parent=1 // pred_region
      %14 = vsyncadd [#allocation3], 0
      %s15 = sshll.u32 %s0, 4
      %s16 = int_to_ptr.hbm [resolvable:$true] %s15
      %s17 = sshll.u32 [#allocation2], 4
      %s18 = int_to_ptr.vmem [resolvable:$true] %s17
      %23 = dma.hbm_to_vmem [thread:$0]  %s16, 256, %s18, [#allocation3], 128, 128, 8
    $region5: #{tpu_custom_call.1} parent=1 // pred_fallthru
      _
    // Predicated region
    $region6: #{tpu_custom_call.1} parent=1 // pred_check
      _
    $region7: #{tpu_custom_call.1} parent=1 // pred_check_branch
      %25 = sbr.rel (0) target = $region9
    $region8: #{tpu_custom_call.1} parent=1 // pred_region
      %27 = vsyncadd [#allocation6], 0
      %s28 = sshll.u32 %s1, 4
      %s29 = int_to_ptr.hbm [resolvable:$true] %s28
      %s30 = sshll.u32 [#allocation5], 4
      %s31 = int_to_ptr.vmem [resolvable:$true] %s30
      %36 = dma.hbm_to_vmem [thread:$0]  %s29, 512, %s31, [#allocation6], 64, 64, 4
    $region9: #{tpu_custom_call.1} parent=1 // pred_fallthru
      _
    // Predicated region
    $region10: #{tpu_custom_call.1} parent=1 // pred_check
      _
    $region11: #{tpu_custom_call.1} parent=1 // pred_check_branch
      %38 = sbr.rel (0) target = $region13
    $region12: #{tpu_custom_call.1} parent=1 // pred_region
      %40 = vsyncadd [#allocation6], 0
      %s41 = sshll.u32 %s2, 4
      %s42 = int_to_ptr.hbm [resolvable:$true] %s41
      %s43 = sshll.u32 [#allocation7], 4
      %s44 = int_to_ptr.vmem [resolvable:$true] %s43
      %49 = dma.hbm_to_vmem [thread:$0]  %s42, 32, %s44, [#allocation6], 16, 16, 1
    $region13: #{tpu_custom_call.1} parent=1 // pred_fallthru
      _
    // Predicated region
    $region14: #{tpu_custom_call.1} parent=1 // pred_check
      _
    $region15: #{tpu_custom_call.1} parent=1 // pred_check_branch
      %51 = sbr.rel (0) target = $region17
    $region16: #{tpu_custom_call.1} parent=1 // pred_region
      %53 = dma.done [#allocation3], 256
    $region17: #{tpu_custom_call.1} parent=1 // pred_fallthru
      _
    // Predicated region
    $region18: #{tpu_custom_call.1} parent=1 // pred_check
      _
    $region19: #{tpu_custom_call.1} parent=1 // pred_check_branch
      %55 = sbr.rel (0) target = $region21
    $region20: #{tpu_custom_call.1} parent=1 // pred_region
      %57 = dma.done [#allocation6], 512
    $region21: #{tpu_custom_call.1} parent=1 // pred_fallthru
      _
    // Predicated region
    $region22: #{tpu_custom_call.1} parent=1 // pred_check
      _
    $region23: #{tpu_custom_call.1} parent=1 // pred_check_branch
      %59 = sbr.rel (0) target = $region25
    $region24: #{tpu_custom_call.1} parent=1 // pred_region
      %61 = dma.done [#allocation6], 32
    $region25: #{tpu_custom_call.1} parent=1 // pred_fallthru
      _
    %v63 = vld [vmem:[#allocation2] sm:$0xff]
    %v64 = vld [vmem:[#allocation2 + $0x8] sm:$0xff]
    %v65 = vpack.c.bf16 %v64, %v63
    %v66 = vld [vmem:[#allocation5] sm:$0xf]
    %v67 = vld [vmem:[#allocation5 + $0x4] sm:$0xf]
    %v68 = vld [vmem:[#allocation5 + $0x8] sm:$0xf]
    %v69 = vld [vmem:[#allocation5 + $0xc] sm:$0xf]
    %v70 = vld [vmem:[#allocation7] sm:$0x1]
    %v72 = vperm.slane %v70, 0
    %v78 = vunpack.c.l.b16 %v66
    %v79 = vunpack.c.l.b16 %v67
    %v80 = vunpack.c.l.b16 %v68
    %v81 = vunpack.c.l.b16 %v69
    %v82 = vpack.c.b16 %v79, %v78
    %v83 = vpack.c.b16 %v81, %v80
    %vm86 = vcmask 261120
    %v88 = vsel %vm86, %v65, 0
    %90 = vmatpush.bf16.msra.mxu0 0
    %91 = vmatpush.bf16.msra.mxu0 0
    %92 = vmatpush.bf16.msra.mxu0 0
    %93 = vmatpush.bf16.msra.mxu0 0
    %94 = vmatpush.bf16.msra.mxu0 0
    %95 = vmatpush.bf16.msra.mxu0 0
    %96 = vmatpush.bf16.msra.mxu0 %v83
    %97 = vmatpush.bf16.msra.mxu0 %v82
    %98 = vmatmul.bf16.gmra.mxu0 %v88
    %v99 = vpop.f32.mrf.mxu0
    %v100 = vadd.f32 %v72, %v99
    %v101 = vpop.f32.mrf.mxu0
    %v102 = vadd.f32 %v72, %v101
    %103 = vdwg.mxu0
    %s104 = scalar_lea.vmem [#allocation5], 16
    %v105 = vld [vmem:[%s104] sm:$0xf]
    %v106 = vld [vmem:[%s104 + $0x4] sm:$0xf]
    %v107 = vld [vmem:[%s104 + $0x8] sm:$0xf]
    %v108 = vld [vmem:[%s104 + $0xc] sm:$0xf]
    %s109 = scalar_lea.vmem [#allocation7], 1
    %v110 = vld [vmem:[%s109] sm:$0x1]
    %v112 = vperm.slane %v110, 0
    %v118 = vunpack.c.l.b16 %v105
    %v119 = vunpack.c.l.b16 %v106
    %v120 = vunpack.c.l.b16 %v107
    %v121 = vunpack.c.l.b16 %v108
    %v122 = vpack.c.b16 %v119, %v118
    %v123 = vpack.c.b16 %v121, %v120
    %126 = vmatpush.bf16.msra.mxu0 0
    %127 = vmatpush.bf16.msra.mxu0 0
    %128 = vmatpush.bf16.msra.mxu0 0
    %129 = vmatpush.bf16.msra.mxu0 0
    %130 = vmatpush.bf16.msra.mxu0 0
    %131 = vmatpush.bf16.msra.mxu0 0
    %132 = vmatpush.bf16.msra.mxu0 %v123
    %133 = vmatpush.bf16.msra.mxu0 %v122
    %134 = vmatmul.bf16.gmra.mxu0 %v88
    %v135 = vpop.f32.mrf.mxu0
    %v136 = vadd.f32 %v112, %v135
    %v137 = vpop.f32.mrf.mxu0
    %v138 = vadd.f32 %v112, %v137
    %139 = vdwg.mxu0
    %v140 = vmax.f32 %v100, 0.0
    %v141 = vmax.f32 %v102, 0.0
    %v142 = vsel %vm86, %v136, -inf
    %143 = vmax.xlane.f32.xlu0 %v142
    %v144 = vpop.xlane.xlu0 %143
    %v145 = vsel %vm86, %v138, -inf
    %146 = vmax.xlane.f32.xlu0 %v145
    %v147 = vpop.xlane.xlu0 %146
    %v148 = vsub.f32 %v136, %v144
    %v149 = vsub.f32 %v138, %v147
    %v150 = vmul.f32 %v148, 1.442695
    %v151 = vpow.pop %v150
    %v152 = vmul.f32 %v149, 1.442695
    %v153 = vpow.pop %v152
    %v154 = vsel %vm86, %v151, 0.0
    %155 = vadd.xlane.f32.xlu0 %v154
    %v156 = vpop.xlane.xlu0 %155
    %v157 = vsel %vm86, %v153, 0.0
    %158 = vadd.xlane.f32.xlu0 %v157
    %v159 = vpop.xlane.xlu0 %158
    %v160 = vrcp.pop %v156
    %v161 = vrcp.pop %v159
    %v162 = vmul.f32 %v151, %v160
    %v163 = vmul.f32 %v153, %v161
    %v164 = vsub.f32 %v140, %v63
    %v165 = vsub.f32 %v141, %v64
    %v166 = vmul.f32 %v162, %v164
    %v167 = vmul.f32 %v163, %v165
    %v168 = vadd.f32 %v63, %v166
    %v169 = vadd.f32 %v64, %v167
    %170 = vst.msk [vmem:[#allocation8] sm:$0xff] %vm86, %v168
    %171 = vst.msk [vmem:[#allocation8 + $0x8] sm:$0xff] %vm86, %v169
    // Predicated region
    $region26: #{tpu_custom_call.1} parent=1 // pred_check
      _
    $region27: #{tpu_custom_call.1} parent=1 // pred_check_branch
      %173 = sbr.rel (0) target = $region29
    $region28: #{tpu_custom_call.1} parent=1 // pred_region
      %175 = vsyncadd [#allocation4], 0
      %s176 = sshll.u32 [#allocation8], 4
      %s177 = int_to_ptr.vmem [resolvable:$true] %s176
      %s178 = sshll.u32 %s3, 4
      %s179 = int_to_ptr.hbm [resolvable:$true] %s178
      %184 = dma.vmem_to_hbm [thread:$0]  %s177, 256, %s179, [#allocation4], 128, 128, 8
    $region29: #{tpu_custom_call.1} parent=1 // pred_fallthru
      _
    // Predicated region
    $region30: #{tpu_custom_call.1} parent=1 // pred_check
      _
    $region31: #{tpu_custom_call.1} parent=1 // pred_check_branch
      %186 = sbr.rel (0) target = $region33
    $region32: #{tpu_custom_call.1} parent=1 // pred_region
      %188 = dma.done [#allocation4], 256
    $region33: #{tpu_custom_call.1} parent=1 // pred_fallthru
      _
    %189 = vsyncpa [#allocation3], 1
    %190 = vsyncpa [#allocation6], 1
    %191 = vsyncpa [#allocation4], 1

</llo_original>
